<compile_context>
chip_gen: v5e
topology: v5e:2x2
jax: 0.10.0
libtpu: 0.0.40
codegen_flags: <defaults>
</compile_context>

<pallas_src>
import jax
import jax.numpy as jnp
from jax.experimental import pallas as pl
from jax.experimental.pallas import tpu as pltpu


def _ca_kernel(x_ref, w1t_ref, w2_ref, o_ref):
    """One grid step over a (Bt, C, S) channels-first block.

    x_ref/o_ref: (Bt, C, S);  w1t_ref, w2_ref: (C, hid) with hid = C // 16.
    """
    x = x_ref[...]                                   # (Bt, C, S), native dtype
    S = x.shape[-1]

    # Adaptive avg / max pool to 1x1: lane-axis reduces, f32 accumulation for
    # the mean via dtype=, no full-tile f32 temporary.
    avg = jnp.sum(x, axis=-1, keepdims=True, dtype=jnp.float32) * (1.0 / S)  # (Bt, C, 1)
    mx = jnp.max(x, axis=-1, keepdims=True).astype(jnp.float32)              # (Bt, C, 1)

    w1t = w1t_ref[...].astype(jnp.float32)           # (C, hid)  -- conv1 weight, transposed
    w2 = w2_ref[...].astype(jnp.float32)             # (C, hid)  -- conv2 weight
    hid = w1t.shape[-1]

    def fc(v):                                       # v: (Bt, C, 1), C on sublanes
        # 1x1 conv -> ReLU -> 1x1 conv on the VPU/XLU.  hid is tiny and
        # static; each hidden unit is one broadcast-multiply + sublane reduce,
        # keeping C on sublanes end-to-end (no lane<->sublane relayout) and
        # leaving the MXU slot free.
        acc = None
        for j in range(hid):
            hj = jnp.sum(v * w1t[:, j:j + 1], axis=1, keepdims=True)   # (Bt, 1, 1)
            hj = jnp.maximum(hj, 0.0)                                   # ReLU
            term = hj * w2[:, j:j + 1]                                  # (Bt, C, 1)
            acc = term if acc is None else acc + term
        return acc                                   # (Bt, C, 1)

    attn = fc(avg) + fc(mx)                          # (Bt, C, 1), f32

    # Residual add in the native dtype, broadcasting the per-channel
    # attention over the spatial (lane) axis.
    o_ref[...] = x + attn.astype(o_ref.dtype)


def _tpu_vmem_and_cores():
    """Physical VMEM capacity (bytes) and whether the chip has 2 TensorCores."""
    vmem_cap = None
    two_tc = False
    try:
        info = pltpu.get_tpu_info()
        cap = int(getattr(info, "vmem_capacity_bytes", 0))
        if cap > 0:
            vmem_cap = cap
    except Exception:
        pass
    try:
        kind = jax.devices()[0].device_kind.lower()
        if "v7" in kind or "7x" in kind:
            two_tc = True
    except Exception:
        pass
    if vmem_cap is None:
        vmem_cap = 64 << 20          # conservative fallback (v7x-sized)
    if vmem_cap <= (80 << 20):       # 64 MiB / core => v7x-class, 2 TCs/chip
        two_tc = True
    return vmem_cap, two_tc


def _choose_tiling(B, C, S, itemsize):
    """Pick the batch tile Bt and the scoped-VMEM limit to request."""
    vmem_cap, two_tc = _tpu_vmem_and_cores()

    # Budget for the double-buffered in+out blocks (2 buffers x 2 arrays).
    if vmem_cap >= (100 << 20):      # v5e / v6e: 128 MiB physical
        budget = 40 << 20
    else:                            # v7x: 64 MiB physical
        budget = 20 << 20

    per_image = 4 * C * S * itemsize
    candidates = [bt for bt in range(1, B + 1)
                  if B % bt == 0 and bt * per_image <= budget]

    if not candidates:
        # Even a single image overshoots the preferred budget: fall back to
        # bt=1 and deliberately raise the scoped-VMEM limit below.
        # (Next step for truly huge C*S would be an S-tiled two-pass kernel.)
        bt = 1
    else:
        bt = max(candidates)
        if two_tc and B >= 2:
            # Prefer >= 2 grid steps so both TensorCores get work; on
            # single-TC chips just take the largest fitting tile.
            multi = [c for c in candidates if (B // c) >= 2]
            if multi:
                bt = max(multi)

    # Tell the compiler how much scoped VMEM we actually need (blocks + slack),
    # with a sane floor and a ceiling that leaves headroom on the chip.
    block_bytes = 4 * bt * C * S * itemsize + 4 * C * max(C // 16, 1) * 4
    vmem_limit = max(16 << 20, block_bytes + (4 << 20))
    vmem_limit = min(vmem_limit, int(0.75 * vmem_cap))
    return bt, int(vmem_limit)


def channel_attention(x_nchw, w1, w2, *, alias_input=True):
    """x_nchw: (B, C, H, W); w1: (hid, C); w2: (C, hid)  (1x1 conv weights)."""
    B, C, H, W = x_nchw.shape
    S = H * W
    hid = w1.shape[0]
    itemsize = x_nchw.dtype.itemsize

    x = x_nchw.reshape(B, C, S)          # free reshape (contiguous), no transpose
    w1t = jnp.transpose(w1)              # (C, hid): keep C on sublanes in-kernel
    # w2 is already (C, hid).

    bt, vmem_limit = _choose_tiling(B, C, S, itemsize)
    grid = (B // bt,)

    out = pl.pallas_call(
        _ca_kernel,
        out_shape=jax.ShapeDtypeStruct((B, C, S), x.dtype),
        grid_spec=pltpu.PrefetchScalarGridSpec(
            num_scalar_prefetch=0,
            grid=grid,
            in_specs=[
                pl.BlockSpec((bt, C, S), lambda b: (b, 0, 0)),
                pl.BlockSpec((C, hid), lambda b: (0, 0)),
                pl.BlockSpec((C, hid), lambda b: (0, 0)),
            ],
            out_specs=pl.BlockSpec((bt, C, S), lambda b: (b, 0, 0)),
        ),
        compiler_params=pltpu.CompilerParams(
            dimension_semantics=("parallel",),
            vmem_limit_bytes=vmem_limit),
        cost_estimate=pl.CostEstimate(
            flops=3 * B * C * S,                       # pooling + residual (FC negligible)
            transcendentals=0,
            bytes_accessed=2 * B * C * S * itemsize),  # mem-bound: one read + one write
        input_output_aliases=({0: 0} if alias_input else {}),
    )(x, w1t, w2)

    return out.reshape(B, C, H, W)       # free reshape back to NCHW


def _reference(x_nchw, w1, w2):
    # Pure-JAX reference mirroring the PyTorch forward.
    avg = jnp.mean(x_nchw, axis=(2, 3))                   # (B, C)
    mx = jnp.max(x_nchw, axis=(2, 3))                     # (B, C)

    def fc(v):                                            # (B, C)
        h = jnp.maximum(v @ w1.T, 0.0)                    # (B, hid)
        return h @ w2.T                                   # (B, C)

    out = fc(avg) + fc(mx)                                # (B, C)
    return out[:, :, None, None] + x_nchw


if __name__ == "__main__":
    key = jax.random.PRNGKey(0)
    # in_planes must be >= 16 so that hidden = in_planes // 16 >= 1.
    B, C, H, W = 2, 32, 16, 16
    hid = C // 16

    kx, k1, k2 = jax.random.split(key, 3)
    x = jax.random.normal(kx, (B, C, H, W), dtype=jnp.float32)
    # Deterministic 1x1-conv weights (Conv2d(C, hid, 1, bias=False) -> (hid, C))
    w1 = jax.random.normal(k1, (hid, C), dtype=jnp.float32) * (1.0 / jnp.sqrt(C))
    w2 = jax.random.normal(k2, (C, hid), dtype=jnp.float32) * (1.0 / jnp.sqrt(hid))

    ref = _reference(x, w1, w2)                            # computed before the kernel
    out = jax.block_until_ready(channel_attention(x, w1, w2))

    assert out.shape == (B, C, H, W)
    assert jnp.allclose(out, ref, atol=1e-4, rtol=1e-4), float(
        jnp.max(jnp.abs(out - ref)))

    print("KERNEL_OK")
</pallas_src>

<mosaic_0001>
module attributes {stable_mosaic.version = 11 : i64} {
  func.func @_ca_kernel(%arg0: i32, %arg1: memref<1x32x256xf32, #tpu.memory_space<vmem>>, %arg2: memref<32x2xf32, #tpu.memory_space<vmem>>, %arg3: memref<32x2xf32, #tpu.memory_space<vmem>>, %arg4: memref<1x32x256xf32, #tpu.memory_space<vmem>>) attributes {dimension_semantics = [#tpu.dimension_semantics<parallel>], iteration_bounds = array<i64: 2>, scalar_prefetch = 0 : i64, scratch_operands = 0 : i64, tpu.core_type = #tpu.core_type<tc>, window_params = [{transform_indices = @transform_0, window_bounds = array<i64: 1, 32, 256>}, {pipeline_mode = #tpu.pipeline_mode<synchronous>, transform_indices = @transform_1, window_bounds = array<i64: 32, 2>}, {pipeline_mode = #tpu.pipeline_mode<synchronous>, transform_indices = @transform_2, window_bounds = array<i64: 32, 2>}, {transform_indices = @transform_3, window_bounds = array<i64: 1, 32, 256>}]} {
    %c0 = arith.constant 0 : index
    %c0_0 = arith.constant 0 : index
    %c0_1 = arith.constant 0 : index
    %0 = vector.load %arg1[%c0, %c0_0, %c0_1] : memref<1x32x256xf32, #tpu.memory_space<vmem>>, vector<1x32x256xf32>
    %cst = arith.constant dense<0.000000e+00> : vector<1x32xf32>
    %1 = vector.multi_reduction <add>, %0, %cst [2] : vector<1x32x256xf32> to vector<1x32xf32>
    %2 = vector.shape_cast %1 : vector<1x32xf32> to vector<1x32x1xf32>
    %cst_2 = arith.constant 3.906250e-03 : f32
    %3 = vector.broadcast %cst_2 : f32 to vector<1x32x1xf32>
    %4 = arith.mulf %2, %3 : vector<1x32x1xf32>
    %cst_3 = arith.constant dense<0xFF800000> : vector<1x32xf32>
    %5 = vector.multi_reduction <maximumf>, %0, %cst_3 [2] : vector<1x32x256xf32> to vector<1x32xf32>
    %6 = vector.shape_cast %5 : vector<1x32xf32> to vector<1x32x1xf32>
    %c0_4 = arith.constant 0 : index
    %c0_5 = arith.constant 0 : index
    %7 = vector.load %arg2[%c0_4, %c0_5] : memref<32x2xf32, #tpu.memory_space<vmem>>, vector<32x2xf32>
    %c0_6 = arith.constant 0 : index
    %c0_7 = arith.constant 0 : index
    %8 = vector.load %arg3[%c0_6, %c0_7] : memref<32x2xf32, #tpu.memory_space<vmem>>, vector<32x2xf32>
    %9 = vector.extract_strided_slice %7 {offsets = [0, 0], sizes = [32, 1], strides = [1, 1]} : vector<32x2xf32> to vector<32x1xf32>
    %10 = vector.shape_cast %9 : vector<32x1xf32> to vector<1x32x1xf32>
    %11 = arith.mulf %4, %10 : vector<1x32x1xf32>
    %cst_8 = arith.constant dense<0.000000e+00> : vector<1x1xf32>
    %12 = vector.multi_reduction <add>, %11, %cst_8 [1] : vector<1x32x1xf32> to vector<1x1xf32>
    %13 = vector.shape_cast %12 : vector<1x1xf32> to vector<1x1x1xf32>
    %cst_9 = arith.constant 0.000000e+00 : f32
    %14 = vector.broadcast %cst_9 : f32 to vector<1x1x1xf32>
    %15 = arith.maximumf %13, %14 : vector<1x1x1xf32>
    %16 = vector.extract_strided_slice %8 {offsets = [0, 0], sizes = [32, 1], strides = [1, 1]} : vector<32x2xf32> to vector<32x1xf32>
    %17 = vector.shape_cast %16 : vector<32x1xf32> to vector<1x32x1xf32>
    %18 = vector.broadcast %15 : vector<1x1x1xf32> to vector<1x32x1xf32>
    %19 = arith.mulf %18, %17 : vector<1x32x1xf32>
    %20 = vector.extract_strided_slice %7 {offsets = [0, 1], sizes = [32, 1], strides = [1, 1]} : vector<32x2xf32> to vector<32x1xf32>
    %21 = vector.shape_cast %20 : vector<32x1xf32> to vector<1x32x1xf32>
    %22 = arith.mulf %4, %21 : vector<1x32x1xf32>
    %cst_10 = arith.constant dense<0.000000e+00> : vector<1x1xf32>
    %23 = vector.multi_reduction <add>, %22, %cst_10 [1] : vector<1x32x1xf32> to vector<1x1xf32>
    %24 = vector.shape_cast %23 : vector<1x1xf32> to vector<1x1x1xf32>
    %cst_11 = arith.constant 0.000000e+00 : f32
    %25 = vector.broadcast %cst_11 : f32 to vector<1x1x1xf32>
    %26 = arith.maximumf %24, %25 : vector<1x1x1xf32>
    %27 = vector.extract_strided_slice %8 {offsets = [0, 1], sizes = [32, 1], strides = [1, 1]} : vector<32x2xf32> to vector<32x1xf32>
    %28 = vector.shape_cast %27 : vector<32x1xf32> to vector<1x32x1xf32>
    %29 = vector.broadcast %26 : vector<1x1x1xf32> to vector<1x32x1xf32>
    %30 = arith.mulf %29, %28 : vector<1x32x1xf32>
    %31 = arith.addf %19, %30 : vector<1x32x1xf32>
    %32 = vector.extract_strided_slice %7 {offsets = [0, 0], sizes = [32, 1], strides = [1, 1]} : vector<32x2xf32> to vector<32x1xf32>
    %33 = vector.shape_cast %32 : vector<32x1xf32> to vector<1x32x1xf32>
    %34 = arith.mulf %6, %33 : vector<1x32x1xf32>
    %cst_12 = arith.constant dense<0.000000e+00> : vector<1x1xf32>
    %35 = vector.multi_reduction <add>, %34, %cst_12 [1] : vector<1x32x1xf32> to vector<1x1xf32>
    %36 = vector.shape_cast %35 : vector<1x1xf32> to vector<1x1x1xf32>
    %cst_13 = arith.constant 0.000000e+00 : f32
    %37 = vector.broadcast %cst_13 : f32 to vector<1x1x1xf32>
    %38 = arith.maximumf %36, %37 : vector<1x1x1xf32>
    %39 = vector.extract_strided_slice %8 {offsets = [0, 0], sizes = [32, 1], strides = [1, 1]} : vector<32x2xf32> to vector<32x1xf32>
    %40 = vector.shape_cast %39 : vector<32x1xf32> to vector<1x32x1xf32>
    %41 = vector.broadcast %38 : vector<1x1x1xf32> to vector<1x32x1xf32>
    %42 = arith.mulf %41, %40 : vector<1x32x1xf32>
    %43 = vector.extract_strided_slice %7 {offsets = [0, 1], sizes = [32, 1], strides = [1, 1]} : vector<32x2xf32> to vector<32x1xf32>
    %44 = vector.shape_cast %43 : vector<32x1xf32> to vector<1x32x1xf32>
    %45 = arith.mulf %6, %44 : vector<1x32x1xf32>
    %cst_14 = arith.constant dense<0.000000e+00> : vector<1x1xf32>
    %46 = vector.multi_reduction <add>, %45, %cst_14 [1] : vector<1x32x1xf32> to vector<1x1xf32>
    %47 = vector.shape_cast %46 : vector<1x1xf32> to vector<1x1x1xf32>
    %cst_15 = arith.constant 0.000000e+00 : f32
    %48 = vector.broadcast %cst_15 : f32 to vector<1x1x1xf32>
    %49 = arith.maximumf %47, %48 : vector<1x1x1xf32>
    %50 = vector.extract_strided_slice %8 {offsets = [0, 1], sizes = [32, 1], strides = [1, 1]} : vector<32x2xf32> to vector<32x1xf32>
    %51 = vector.shape_cast %50 : vector<32x1xf32> to vector<1x32x1xf32>
    %52 = vector.broadcast %49 : vector<1x1x1xf32> to vector<1x32x1xf32>
    %53 = arith.mulf %52, %51 : vector<1x32x1xf32>
    %54 = arith.addf %42, %53 : vector<1x32x1xf32>
    %55 = arith.addf %31, %54 : vector<1x32x1xf32>
    %56 = vector.broadcast %55 : vector<1x32x1xf32> to vector<1x32x256xf32>
    %57 = arith.addf %0, %56 : vector<1x32x256xf32>
    %c0_16 = arith.constant 0 : index
    %c0_17 = arith.constant 0 : index
    %c0_18 = arith.constant 0 : index
    %58 = vector.load %arg4[%c0_16, %c0_17, %c0_18] : memref<1x32x256xf32, #tpu.memory_space<vmem>>, vector<1x32x256xf32>
    tpu.vector_store %arg4[%c0_16, %c0_17, %c0_18], %57 {strides = array<i32>} : memref<1x32x256xf32, #tpu.memory_space<vmem>>, vector<1x32x256xf32>,
    return
  }
  func.func @transform_0(%arg0: i32) -> (i32, i32, i32) {
    %c0_i32 = arith.constant 0 : i32
    %c0_i32_0 = arith.constant 0 : i32
    %c0_i32_1 = arith.constant 0 : i32
    return %arg0, %c0_i32, %c0_i32_0 : i32, i32, i32
  }
  func.func @transform_1(%arg0: i32) -> (i32, i32) {
    %c0_i32 = arith.constant 0 : i32
    %c0_i32_0 = arith.constant 0 : i32
    %c0_i32_1 = arith.constant 0 : i32
    return %c0_i32, %c0_i32_0 : i32, i32
  }
  func.func @transform_2(%arg0: i32) -> (i32, i32) {
    %c0_i32 = arith.constant 0 : i32
    %c0_i32_0 = arith.constant 0 : i32
    %c0_i32_1 = arith.constant 0 : i32
    return %c0_i32, %c0_i32_0 : i32, i32
  }
  func.func @transform_3(%arg0: i32) -> (i32, i32, i32) {
    %c0_i32 = arith.constant 0 : i32
    %c0_i32_0 = arith.constant 0 : i32
    %c0_i32_1 = arith.constant 0 : i32
    return %arg0, %c0_i32, %c0_i32_0 : i32, i32, i32
  }
}

</mosaic_0001>

<llo_original>
// kernel: tpu_custom_call.1
$region0: #{tpu_custom_call.1}
  #allocation0 [shape = 'u32[]', space=smem, size = 0x4, offset = 0x4, fixed_abs, tag = 'smem constant byte address 0x4 - core index']
  #allocation1 [shape = 'u32[72,128]{1,0:T(1,128)}', space=vmem, size = 0x9000, scoped, tag = 'internal scratch']
  %s0 = inlined_call_operand.hbm [shape: f32[2,32,256], index: 0, kind: input, shape index: {}, may-alias: {0,3}]
  %s1 = inlined_call_operand.vmem [shape: f32[32,2], index: 1, kind: input, shape index: {}]
  %s2 = inlined_call_operand.vmem [shape: f32[32,2], index: 2, kind: input, shape index: {}]
  %s3 = inlined_call_operand.hbm [shape: f32[2,32,256], index: 3, kind: output, shape index: {}, may-alias: {0,3}]
  %s4 = sld [smem:[#allocation0]]
  $region49: #{tpu_custom_call.1} parent=0
    _
  %s6 = ssub.s32 1, %s4
  %s7 = scalar_select 0, %s6, %s4
  $region1: #{tpu_custom_call.1} parent=0
    #allocation2 [shape = 'u8[65536]{0}', space=vmem, size = 0x10000, scoped, tag = 'input window, operand 0']
    #allocation3 [shape = 's32[2]{0}', space=sflag, size = 0x8, scoped, tag = 'scoped memory for tpu_custom_call.1']
    #allocation4 [shape = 's32[2]{0}', space=sflag, size = 0x8, scoped, tag = 'scoped memory for tpu_custom_call.1']
    #allocation5 [shape = 'u8[65536]{0}', space=vmem, size = 0x10000, scoped, tag = 'output window, operand 0']
    %8 = vsyncpa [#allocation3], 0
    %s9 = scalar_lea.sflag [#allocation3], 1
    %10 = vsyncpa %s9, 0
    %11 = vsyncpa [#allocation4], 0
    %s12 = scalar_lea.sflag [#allocation4], 1
    %13 = vsyncpa %s12, 0
    loop: start=0, step=1, limit=4
    $region2: #{tpu_custom_call.1} parent=1 // loop_pre_header
      _
    $region3: #{tpu_custom_call.1} parent=1 // loop_header
      %s15 = sphi 0, %s19
      %p16 = scmp.ge.s32.totalorder %s15, 4
      %s25 = sphi 0, %s27
      %s28 = sphi 0, %s25
      %s29 = sphi 0, %s28
      %s45 = sphi 0, %s29
      %s49 = sphi 0, %s49
      %s51 = sphi 0, %s49
      %s52 = sphi 0, %s51
      %s66 = sphi 0, %s52
      %s70 = sphi 0, %s70
      %s72 = sphi 0, %s70
      %s73 = sphi 0, %s72
      %s87 = sphi 0, %s73
      %s93 = sphi 0, %s95
      %s96 = sphi 0, %s93
      %s97 = sphi 0, %s96
      %s113 = sphi 0, %s97
    $region4: #{tpu_custom_call.1} parent=1 // loop_header_branch
      %18 = sbr.rel (%p16) target = $region8
    $region5: #{tpu_custom_call.1} parent=1 // loop_body
      %s20 = ssub.s32 %s15, 1
      %s21 = ssub.s32 %s15, 2
      %s22 = sadd.s32 %s15, 1
      %s23 = ssub.s32 %s15, %s22
      %p24 = scmp.eq.s32.totalorder %s23, 0
      %s26 = sadd.s32 %s25, 1
      %s27 = scalar_select %p24, %s25, %s26
      %p30 = pneg %p24
      %p31 = scmp.eq.s32.totalorder %s15, 1
      %p32 = por %p30, %p31
      %p33 = scmp.ne.s32.totalorder %s25, %s28
      %p34 = scmp.eq.s32.totalorder %s15, 0
      %p35 = por %p33, %p34
      %p36 = scmp.ne.s32.totalorder %s25, %s28
      %p37 = scmp.eq.s32.totalorder %s20, 1
      %p38 = por %p36, %p37
      %p39 = scmp.ne.s32.totalorder %s28, %s29
      %p40 = scmp.eq.s32.totalorder %s20, 0
      %p41 = por %p39, %p40
      %p42 = scmp.ne.s32.totalorder %s28, %s29
      %p43 = scmp.eq.s32.totalorder %s21, 1
      %p44 = por %p42, %p43
      %p46 = scmp.ne.s32.totalorder %s29, %s45
      %p47 = scmp.eq.s32.totalorder %s21, 0
      %p48 = por %p46, %p47
      %s50 = sadd.s32 %s49, 1
      %p53 = scmp.eq.s32.totalorder %s15, 1
      %p54 = scmp.ne.s32.totalorder %s49, %s51
      %p55 = scmp.eq.s32.totalorder %s15, 0
      %p56 = por %p54, %p55
      %p57 = scmp.ne.s32.totalorder %s49, %s51
      %p58 = scmp.eq.s32.totalorder %s20, 1
      %p59 = por %p57, %p58
      %p60 = scmp.ne.s32.totalorder %s51, %s52
      %p61 = scmp.eq.s32.totalorder %s20, 0
      %p62 = por %p60, %p61
      %p63 = scmp.ne.s32.totalorder %s51, %s52
      %p64 = scmp.eq.s32.totalorder %s21, 1
      %p65 = por %p63, %p64
      %p67 = scmp.ne.s32.totalorder %s52, %s66
      %p68 = scmp.eq.s32.totalorder %s21, 0
      %p69 = por %p67, %p68
      %s71 = sadd.s32 %s70, 1
      %p74 = scmp.eq.s32.totalorder %s15, 1
      %p75 = scmp.ne.s32.totalorder %s70, %s72
      %p76 = scmp.eq.s32.totalorder %s15, 0
      %p77 = por %p75, %p76
      %p78 = scmp.ne.s32.totalorder %s70, %s72
      %p79 = scmp.eq.s32.totalorder %s20, 1
      %p80 = por %p78, %p79
      %p81 = scmp.ne.s32.totalorder %s72, %s73
      %p82 = scmp.eq.s32.totalorder %s20, 0
      %p83 = por %p81, %p82
      %p84 = scmp.ne.s32.totalorder %s72, %s73
      %p85 = scmp.eq.s32.totalorder %s21, 1
      %p86 = por %p84, %p85
      %p88 = scmp.ne.s32.totalorder %s73, %s87
      %p89 = scmp.eq.s32.totalorder %s21, 0
      %p90 = por %p88, %p89
      %s91 = ssub.s32 %s15, %s22
      %p92 = scmp.eq.s32.totalorder %s91, 0
      %s94 = sadd.s32 %s93, 1
      %s95 = scalar_select %p92, %s93, %s94
      %p98 = pneg %p92
      %p99 = scmp.eq.s32.totalorder %s15, 1
      %p100 = por %p98, %p99
      %p101 = scmp.ne.s32.totalorder %s93, %s96
      %p102 = scmp.eq.s32.totalorder %s15, 0
      %p103 = por %p101, %p102
      %p104 = scmp.ne.s32.totalorder %s93, %s96
      %p105 = scmp.eq.s32.totalorder %s20, 1
      %p106 = por %p104, %p105
      %p107 = scmp.ne.s32.totalorder %s96, %s97
      %p108 = scmp.eq.s32.totalorder %s20, 0
      %p109 = por %p107, %p108
      %p110 = scmp.ne.s32.totalorder %s96, %s97
      %p111 = scmp.eq.s32.totalorder %s21, 1
      %p112 = por %p110, %p111
      %p114 = scmp.ne.s32.totalorder %s97, %s113
      %p115 = scmp.eq.s32.totalorder %s21, 0
      %p116 = por %p114, %p115
      %p117 = scmp.le.s32.totalorder 1, %s15
      %p118 = scmp.lt.s32.totalorder %s15, 3
      %p119 = pnand %p117, %p118
      %p120 = pneg %p119
      // Predicated region
      $region9: #{tpu_custom_call.1} parent=5 // pred_check
        _
      $region10: #{tpu_custom_call.1} parent=5 // pred_check_branch
        %122 = sbr.rel (%p119) target = $region12
      $region11: #{tpu_custom_call.1} parent=5 // pred_region
        %s123 = ssub.s32 %s15, 1
        // Predicated region
        $region13: #{tpu_custom_call.1} parent=11 // pred_check
          %p124 = pneg %p62
        $region14: #{tpu_custom_call.1} parent=11 // pred_check_branch
          %126 = sbr.rel (%p124) target = $region16
        $region15: #{tpu_custom_call.1} parent=11 // pred_region
          _
        $region16: #{tpu_custom_call.1} parent=11 // pred_fallthru
          _
        // Predicated region
        $region17: #{tpu_custom_call.1} parent=11 // pred_check
          %p127 = pneg %p83
        $region18: #{tpu_custom_call.1} parent=11 // pred_check_branch
          %129 = sbr.rel (%p127) target = $region20
        $region19: #{tpu_custom_call.1} parent=11 // pred_region
          _
        $region20: #{tpu_custom_call.1} parent=11 // pred_fallthru
          _
      $region12: #{tpu_custom_call.1} parent=5 // pred_fallthru
        _
      %p130 = scmp.lt.s32.totalorder %s15, 2
      // Predicated region
      $region21: #{tpu_custom_call.1} parent=5 // pred_check
        %p131 = pneg %p130
      $region22: #{tpu_custom_call.1} parent=5 // pred_check_branch
        %133 = sbr.rel (%p131) target = $region24
      $region23: #{tpu_custom_call.1} parent=5 // pred_region
        // Predicated region
        $region25: #{tpu_custom_call.1} parent=23 // pred_check
          %p134 = pneg %p35
        $region26: #{tpu_custom_call.1} parent=23 // pred_check_branch
          %136 = sbr.rel (%p134) target = $region28
        $region27: #{tpu_custom_call.1} parent=23 // pred_region
          %s137 = sand.u32 %s25, 1
          %s138 = scalar_lea.sflag [#allocation3], %s137
          %s139 = sand.u32 %s25, 1
          %s140 = smul.addr %s139, 64
          %s141 = scalar_lea.vmem [#allocation2], %s140
          %143 = vsyncadd %s138, 0
          %s144 = smul.addr %s15, 8
          %s145 = smul.addr %s144, 8
          %s146 = scalar_lea.hbm %s0, %s145
          %s147 = sshll.u32 %s146, 4
          %s148 = int_to_ptr.hbm [resolvable:$true] %s147
          %s149 = sshll.u32 %s141, 4
          %s150 = int_to_ptr.vmem [resolvable:$true] %s149
          %155 = dma.hbm_to_vmem [thread:$0]  %s148, 1024, %s150, %s138, 256, 256, 16
        $region28: #{tpu_custom_call.1} parent=23 // pred_fallthru
          _
      $region24: #{tpu_custom_call.1} parent=5 // pred_fallthru
        _
      %p156 = scmp.le.s32.totalorder 1, %s15
      %p157 = scmp.lt.s32.totalorder %s15, 3
      %p158 = pnand %p156, %p157
      %p159 = pneg %p158
      // Predicated region
      $region29: #{tpu_custom_call.1} parent=5 // pred_check
        _
      $region30: #{tpu_custom_call.1} parent=5 // pred_check_branch
        %161 = sbr.rel (%p158) target = $region32
      $region31: #{tpu_custom_call.1} parent=5 // pred_region
        %s162 = ssub.s32 %s15, 1
        %s163 = sand.u32 %s28, 1
        %s164 = scalar_lea.sflag [#allocation3], %s163
        %s165 = sand.u32 %s28, 1
        %s166 = smul.addr %s165, 64
        %s167 = scalar_lea.vmem [#allocation2], %s166
        // Predicated region
        $region33: #{tpu_custom_call.1} parent=31 // pred_check
          %p168 = pneg %p41
        $region34: #{tpu_custom_call.1} parent=31 // pred_check_branch
          %170 = sbr.rel (%p168) target = $region36
        $region35: #{tpu_custom_call.1} parent=31 // pred_region
          %172 = dma.done %s164, 1024
        $region36: #{tpu_custom_call.1} parent=31 // pred_fallthru
          _
        %s173 = sand.u32 %s28, 1
        %s174 = scalar_lea.sflag [#allocation3], %s173
        %s175 = sand.u32 %s28, 1
        %s176 = smul.addr %s175, 64
        %s177 = scalar_lea.vmem [#allocation2], %s176
        %p178 = pneg %p41
        %p179 = pneg %p38
        %p180 = pneg %p62
        %p181 = pneg %p59
        %p182 = pneg %p83
        %p183 = pneg %p80
        %p184 = pneg %p109
        %p185 = pneg %p106
        %s186 = sand.u32 %s96, 1
        %s187 = scalar_lea.sflag [#allocation4], %s186
        %s188 = sand.u32 %s96, 1
        %s189 = smul.addr %s188, 64
        %s190 = scalar_lea.vmem [#allocation5], %s189
        %v191 = vld [vmem:[%s167] sm:$0xff]
        %v192 = vld [vmem:[%s167 + $0x8] sm:$0xff]
        %v193 = vld [vmem:[%s167 + $0x10] sm:$0xff]
        %v194 = vld [vmem:[%s167 + $0x18] sm:$0xff]
        %v195 = vld [vmem:[%s167 + $0x20] sm:$0xff]
        %v196 = vld [vmem:[%s167 + $0x28] sm:$0xff]
        %v197 = vld [vmem:[%s167 + $0x30] sm:$0xff]
        %v198 = vld [vmem:[%s167 + $0x38] sm:$0xff]
        %v199 = vadd.f32 %v191, %v192
        %200 = vadd.xlane.f32.xlu0 %v199
        %v201 = vpop.xlane.xlu0 %200
        %v202 = vadd.f32 %v193, %v194
        %203 = vadd.xlane.f32.xlu0 %v202
        %v204 = vpop.xlane.xlu0 %203
        %v205 = vadd.f32 %v195, %v196
        %206 = vadd.xlane.f32.xlu0 %v205
        %v207 = vpop.xlane.xlu0 %206
        %v208 = vadd.f32 %v197, %v198
        %209 = vadd.xlane.f32.xlu0 %v208
        %v210 = vpop.xlane.xlu0 %209
        %v211 = vmul.f32 %v201, 0.00390625
        %v212 = vmul.f32 %v204, 0.00390625
        %v213 = vmul.f32 %v207, 0.00390625
        %v214 = vmul.f32 %v210, 0.00390625
        %v215 = vmax.f32 %v191, %v192
        %216 = vmax.xlane.f32.xlu0 %v215
        %v217 = vpop.xlane.xlu0 %216
        %v218 = vmax.f32 %v193, %v194
        %219 = vmax.xlane.f32.xlu0 %v218
        %v220 = vpop.xlane.xlu0 %219
        %v221 = vmax.f32 %v195, %v196
        %222 = vmax.xlane.f32.xlu0 %v221
        %v223 = vpop.xlane.xlu0 %222
        %v224 = vmax.f32 %v197, %v198
        %225 = vmax.xlane.f32.xlu0 %v224
        %v226 = vpop.xlane.xlu0 %225
        %v227 = vld [vmem:[%s1] sm:$0xff]
        %v228 = vld [vmem:[%s1 + $0x8] sm:$0xff]
        %v229 = vld [vmem:[%s1 + $0x10] sm:$0xff]
        %v230 = vld [vmem:[%s1 + $0x18] sm:$0xff]
        %v231 = vld [vmem:[%s2] sm:$0xff]
        %v232 = vld [vmem:[%s2 + $0x8] sm:$0xff]
        %v233 = vld [vmem:[%s2 + $0x10] sm:$0xff]
        %v234 = vld [vmem:[%s2 + $0x18] sm:$0xff]
        %v235 = vmul.f32 %v211, %v227
        %v236 = vmul.f32 %v212, %v228
        %v237 = vmul.f32 %v213, %v229
        %v238 = vmul.f32 %v214, %v230
        %vm239 = vcmask 7168
        %v240 = vsel %vm239, %v235, 0.0
        %v241 = vsel %vm239, %v236, 0.0
        %v242 = vadd.f32 %v240, %v241
        %v243 = vsel %vm239, %v237, 0.0
        %v244 = vadd.f32 %v242, %v243
        %v245 = vsel %vm239, %v238, 0.0
        %v246 = vadd.f32 %v244, %v245
        %v247 = vrot.slane %v246, 4
        %v248 = vadd.f32 %v246, %v247
        %v249 = vrot.slane %v248, 2
        %v250 = vadd.f32 %v248, %v249
        %v251 = vrot.slane %v250, 1
        %v252 = vadd.f32 %v250, %v251
        %v253 = vmax.f32 %v252, 0.0
        %v254 = vmul.f32 %v253, %v231
        %v255 = vmul.f32 %v253, %v232
        %v256 = vmul.f32 %v253, %v233
        %v257 = vmul.f32 %v253, %v234
        %vm258 = vcmask 15368
        %v259 = vsel %vm258, %v235, 0.0
        %v260 = vsel %vm258, %v236, 0.0
        %v261 = vadd.f32 %v259, %v260
        %v262 = vsel %vm258, %v237, 0.0
        %v263 = vadd.f32 %v261, %v262
        %v264 = vsel %vm258, %v238, 0.0
        %v265 = vadd.f32 %v263, %v264
        %v266 = vrot.slane %v265, 4
        %v267 = vadd.f32 %v265, %v266
        %v268 = vrot.slane %v267, 2
        %v269 = vadd.f32 %v267, %v268
        %v270 = vrot.slane %v269, 1
        %v271 = vadd.f32 %v269, %v270
        %v272 = vmax.f32 %v271, 0.0
        %v273 = vmul.f32 %v272, %v231
        %v274 = vmul.f32 %v272, %v232
        %v275 = vmul.f32 %v272, %v233
        %v276 = vmul.f32 %v272, %v234
        %281 = vrot.lane.b32.xlu0 %v273, 127
        %v282 = vpop.permute.xlu0 %281
        %283 = vrot.lane.b32.xlu0 %v274, 127
        %v284 = vpop.permute.xlu0 %283
        %285 = vrot.lane.b32.xlu0 %v275, 127
        %v286 = vpop.permute.xlu0 %285
        %287 = vrot.lane.b32.xlu0 %v276, 127
        %v288 = vpop.permute.xlu0 %287
        %v293 = vadd.f32 %v254, %v282
        %v294 = vadd.f32 %v255, %v284
        %v295 = vadd.f32 %v256, %v286
        %v296 = vadd.f32 %v257, %v288
        %v297 = vmul.f32 %v217, %v227
        %v298 = vmul.f32 %v220, %v228
        %v299 = vmul.f32 %v223, %v229
        %v300 = vmul.f32 %v226, %v230
        %v301 = vsel %vm239, %v297, 0.0
        %v302 = vsel %vm239, %v298, 0.0
        %v303 = vadd.f32 %v301, %v302
        %v304 = vsel %vm239, %v299, 0.0
        %v305 = vadd.f32 %v303, %v304
        %v306 = vsel %vm239, %v300, 0.0
        %v307 = vadd.f32 %v305, %v306
        %v308 = vrot.slane %v307, 4
        %v309 = vadd.f32 %v307, %v308
        %v310 = vrot.slane %v309, 2
        %v311 = vadd.f32 %v309, %v310
        %v312 = vrot.slane %v311, 1
        %v313 = vadd.f32 %v311, %v312
        %v314 = vmax.f32 %v313, 0.0
        %v315 = vmul.f32 %v314, %v231
        %v316 = vmul.f32 %v314, %v232
        %v317 = vmul.f32 %v314, %v233
        %v318 = vmul.f32 %v314, %v234
        %v319 = vsel %vm258, %v297, 0.0
        %v320 = vsel %vm258, %v298, 0.0
        %v321 = vadd.f32 %v319, %v320
        %v322 = vsel %vm258, %v299, 0.0
        %v323 = vadd.f32 %v321, %v322
        %v324 = vsel %vm258, %v300, 0.0
        %v325 = vadd.f32 %v323, %v324
        %v326 = vrot.slane %v325, 4
        %v327 = vadd.f32 %v325, %v326
        %v328 = vrot.slane %v327, 2
        %v329 = vadd.f32 %v327, %v328
        %v330 = vrot.slane %v329, 1
        %v331 = vadd.f32 %v329, %v330
        %v332 = vmax.f32 %v331, 0.0
        %v333 = vmul.f32 %v332, %v231
        %v334 = vmul.f32 %v332, %v232
        %v335 = vmul.f32 %v332, %v233
        %v336 = vmul.f32 %v332, %v234
        %341 = vrot.lane.b32.xlu0 %v333, 127
        %v342 = vpop.permute.xlu0 %341
        %343 = vrot.lane.b32.xlu0 %v334, 127
        %v344 = vpop.permute.xlu0 %343
        %345 = vrot.lane.b32.xlu0 %v335, 127
        %v346 = vpop.permute.xlu0 %345
        %347 = vrot.lane.b32.xlu0 %v336, 127
        %v348 = vpop.permute.xlu0 %347
        %v353 = vadd.f32 %v315, %v342
        %v354 = vadd.f32 %v316, %v344
        %v355 = vadd.f32 %v317, %v346
        %v356 = vadd.f32 %v318, %v348
        %v357 = vadd.f32 %v293, %v353
        %v358 = vadd.f32 %v294, %v354
        %v359 = vadd.f32 %v295, %v355
        %v360 = vadd.f32 %v296, %v356
        %362 = vset.pattern.permute.xlu0 0
        %363 = vperm.xlu0 %362, %v357
        %v364 = vpop.permute.xlu0 %363
        %367 = vset.pattern.permute.xlu0 0
        %368 = vperm.xlu0 %367, %v358
        %v369 = vpop.permute.xlu0 %368
        %372 = vset.pattern.permute.xlu0 0
        %373 = vperm.xlu0 %372, %v359
        %v374 = vpop.permute.xlu0 %373
        %377 = vset.pattern.permute.xlu0 0
        %378 = vperm.xlu0 %377, %v360
        %v379 = vpop.permute.xlu0 %378
        %v381 = vadd.f32 %v191, %v364
        %v382 = vadd.f32 %v192, %v364
        %v383 = vadd.f32 %v193, %v369
        %v384 = vadd.f32 %v194, %v369
        %v385 = vadd.f32 %v195, %v374
        %v386 = vadd.f32 %v196, %v374
        %v387 = vadd.f32 %v197, %v379
        %v388 = vadd.f32 %v198, %v379
        %389 = vst [vmem:[%s190] sm:$0xff] %v381
        %390 = vst [vmem:[%s190 + $0x8] sm:$0xff] %v382
        %391 = vst [vmem:[%s190 + $0x10] sm:$0xff] %v383
        %392 = vst [vmem:[%s190 + $0x18] sm:$0xff] %v384
        %393 = vst [vmem:[%s190 + $0x20] sm:$0xff] %v385
        %394 = vst [vmem:[%s190 + $0x28] sm:$0xff] %v386
        %395 = vst [vmem:[%s190 + $0x30] sm:$0xff] %v387
        %396 = vst [vmem:[%s190 + $0x38] sm:$0xff] %v388
        %s397 = sand.u32 %s96, 1
        %s398 = scalar_lea.sflag [#allocation4], %s397
        %s399 = sand.u32 %s96, 1
        %s400 = smul.addr %s399, 64
        %s401 = scalar_lea.vmem [#allocation5], %s400
        // Predicated region
        $region37: #{tpu_custom_call.1} parent=31 // pred_check
          %p402 = pneg %p106
        $region38: #{tpu_custom_call.1} parent=31 // pred_check_branch
          %404 = sbr.rel (%p402) target = $region40
        $region39: #{tpu_custom_call.1} parent=31 // pred_region
          %406 = vsyncadd %s398, 0
          %s407 = smul.addr %s20, 8
          %s408 = smul.addr %s407, 8
          %s409 = scalar_lea.hbm %s3, %s408
          %s410 = sshll.u32 %s401, 4
          %s411 = int_to_ptr.vmem [resolvable:$true] %s410
          %s412 = sshll.u32 %s409, 4
          %s413 = int_to_ptr.hbm [resolvable:$true] %s412
          %418 = dma.vmem_to_hbm [thread:$0]  %s411, 1024, %s413, %s398, 256, 256, 16
        $region40: #{tpu_custom_call.1} parent=31 // pred_fallthru
          _
      $region32: #{tpu_custom_call.1} parent=5 // pred_fallthru
        _
      %p419 = scmp.le.s32.totalorder 2, %s15
      // Predicated region
      $region41: #{tpu_custom_call.1} parent=5 // pred_check
        %p420 = pneg %p419
      $region42: #{tpu_custom_call.1} parent=5 // pred_check_branch
        %422 = sbr.rel (%p420) target = $region44
      $region43: #{tpu_custom_call.1} parent=5 // pred_region
        %s423 = ssub.s32 %s15, 2
        // Predicated region
        $region45: #{tpu_custom_call.1} parent=43 // pred_check
          %p424 = pneg %p112
        $region46: #{tpu_custom_call.1} parent=43 // pred_check_branch
          %426 = sbr.rel (%p424) target = $region48
        $region47: #{tpu_custom_call.1} parent=43 // pred_region
          %s427 = sand.u32 %s97, 1
          %s428 = scalar_lea.sflag [#allocation4], %s427
          %s429 = sand.u32 %s97, 1
          %s430 = smul.addr %s429, 64
          %s431 = scalar_lea.vmem [#allocation5], %s430
          %433 = dma.done %s428, 1024
        $region48: #{tpu_custom_call.1} parent=43 // pred_fallthru
          _
      $region44: #{tpu_custom_call.1} parent=5 // pred_fallthru
        _
    $region6: #{tpu_custom_call.1} parent=1 // loop_footer
      %s19 = sadd.s32 1, %s15
    $region7: #{tpu_custom_call.1} parent=1 // loop_footer_branch
      %14 = sbr.rel target = $region3
    $region8: #{tpu_custom_call.1} parent=1 // loop_exit
      _
    %434 = vsyncpa [#allocation3], 1
    %s435 = scalar_lea.sflag [#allocation3], 1
    %436 = vsyncpa %s435, 1
    %437 = vsyncpa [#allocation4], 1
    %s438 = scalar_lea.sflag [#allocation4], 1
    %439 = vsyncpa %s438, 1

</llo_original>
